<compile_context>
chip_gen: v6e
topology: v6e:2x2x1
jax: 0.10.0
libtpu: 0.0.40
codegen_flags: <defaults>
</compile_context>

<pallas_src>
import jax
import jax.numpy as jnp
from jax.experimental import pallas as pl
from jax.experimental.pallas import tpu as pltpu


def _linear_kernel(x_ref, w_ref, b_ref, o_ref):
    """One (batch-block, E-block, spatial-tile) grid step.

    x_ref: (Bb, C, tn)   activation slab of x[bb*Bb : (bb+1)*Bb]   (tn % 128 == 0)
    w_ref: (tE, C)       weight slab, VMEM-resident across the inner grid axes
    b_ref: (tE, 1)       bias column, VMEM-resident
    o_ref: (Bb, tE, tn)  lane-dense output tile
    """
    w = w_ref[...]
    bias = b_ref[...].astype(jnp.float32)
    # Bb is a small static constant -> short unrolled sequence of MXU matmuls,
    # each with f32 accumulation and an f32 bias add.
    for i in range(x_ref.shape[0]):
        acc = jnp.dot(w, x_ref[i], preferred_element_type=jnp.float32)
        o_ref[i] = (acc + bias).astype(o_ref.dtype)


def _vmem_budgets():
    """Generation-aware (tile_budget_bytes, vmem_limit_bytes)."""
    mib = 1024 * 1024
    try:
        cap = int(pltpu.get_tpu_info().vmem_capacity_bytes)
    except Exception:
        cap = 64 * mib                      # conservative fallback: v7x-sized VMEM
    if cap >= 100 * mib:                    # v5e / v6e: 128 MiB physical VMEM
        return 88 * mib, 100 * mib
    return 40 * mib, 48 * mib               # v7x: 64 MiB physical, leave scratch headroom


def _choose_tiling(B, C, E, HW, itemsize, tile_budget):
    """Pick static (Bb, tE, tn): batch block, E tile, spatial tile."""
    mult8 = lambda v: max(8, (v // 8) * 8)

    # --- E tile: keep the whole weight resident if it fits in half the budget;
    # otherwise tile E in multiples of 256 (MXU row dimension).  Resident
    # weight/bias are charged at two buffers (see module note) even though the
    # constant index_map means they are only DMA'd when the E-block changes.
    weight_budget = tile_budget // 2
    row_bytes = 2 * (C + 1) * itemsize           # one weight+bias row, 2x buffered
    if E * row_bytes <= weight_budget:
        tE = E
    else:
        cap = max(1, weight_budget // row_bytes)
        tE = (cap // 256) * 256 if cap >= 256 else mult8(cap)
        tE = min(tE, E)
        # TODO(synk): if C is also huge (a single tE x C slab still over budget),
        # add a K grid axis with an f32 VMEM accumulator instead of shrinking tE.
    resident = tE * row_bytes

    # --- spatial tile: as many 128-lane groups as the remaining budget allows
    # (double-buffered activation + output tiles), capped at 4096 lanes and at
    # the 128-rounded spatial extent.  No divisibility requirement: the grid
    # uses pl.cdiv and Pallas masks the ragged last tile.
    HW128 = -(-HW // 128) * 128
    per_lane = 2 * (C + tE) * itemsize            # dbl-buffered x-tile + out-tile
    remaining = max(tile_budget - resident, per_lane * 128)
    tn = min(4096, HW128, (remaining // per_lane // 128) * 128)
    tn = max(tn, 128)

    # --- batch block: when one spatial tile already covers the whole feature
    # map, fold several batches per grid step (bigger DMAs, fewer ~0.35us steps).
    Bb = 1
    while (tn >= HW128 and Bb < 8 and Bb * 2 <= B and B % (Bb * 2) == 0
           and 2 * (Bb * 2) * (C + tE) * tn * itemsize <= remaining):
        Bb *= 2
    return Bb, tE, tn


@jax.jit
def linear_nchw(x, weight, bias):
    """x: (B, C, H, W); weight: (E, C) (PyTorch nn.Linear layout); bias: (E,).

    Returns (B, E, H, W), identical semantics to the reference PyTorch module.
    Output dtype follows x.dtype (keep x/weight dtypes aligned with PyTorch).
    """
    B, C, H, W = x.shape
    E = weight.shape[0]
    HW = H * W
    itemsize = jnp.dtype(x.dtype).itemsize        # real dtype: accumulation is in regs

    tile_budget, vmem_limit = _vmem_budgets()
    Bb, tE, tn = _choose_tiling(B, C, E, HW, itemsize, tile_budget)
    grid = (B // Bb, pl.cdiv(E, tE), pl.cdiv(HW, tn))

    # Free views of the NCHW layout -- no transpose, no copy.
    x3d = x.reshape(B, C, HW)
    bias2d = bias.reshape(E, 1)

    cost = pl.CostEstimate(
        flops=2 * B * E * C * HW,
        transcendentals=0,
        bytes_accessed=(B * C * HW + E * C + E + B * E * HW) * itemsize,
    )

    out3d = pl.pallas_call(
        _linear_kernel,
        out_shape=jax.ShapeDtypeStruct((B, E, HW), x.dtype),
        grid_spec=pltpu.PrefetchScalarGridSpec(
            num_scalar_prefetch=0,
            grid=grid,                                    # (batch-blk, E-blk, spatial)
            in_specs=[
                pl.BlockSpec((Bb, C, tn), lambda b, e, j: (b, 0, j)),   # activations
                # Constant-in-(b, j) index_maps: the weight/bias slab is only
                # re-DMA'd when the E-block index changes, i.e. it stays VMEM
                # resident across every spatial tile of every batch block.
                pl.BlockSpec((tE, C), lambda b, e, j: (e, 0)),          # weight slab
                pl.BlockSpec((tE, 1), lambda b, e, j: (e, 0)),          # bias slab
            ],
            out_specs=pl.BlockSpec((Bb, tE, tn), lambda b, e, j: (b, e, j)),
        ),
        compiler_params=pltpu.CompilerParams(
            # All three axes are independent (the C reduction lives inside the
            # kernel) => shardable across v7x's two TensorCores.
            dimension_semantics=("parallel", "parallel", "parallel"),
            vmem_limit_bytes=vmem_limit,
        ),
        cost_estimate=cost,
    )(x3d, weight, bias2d)

    # Free view back to NCHW -- matches the PyTorch permute/contiguous output.
    return out3d.reshape(B, E, H, W)


def _init_linear_params(key, input_dim, embed_dim, dtype=jnp.float32):
    # Deterministic init mimicking nn.Linear: U(-1/sqrt(fan_in), 1/sqrt(fan_in)).
    kw, kb = jax.random.split(key)
    bound = 1.0 / (input_dim ** 0.5)
    weight = jax.random.uniform(kw, (embed_dim, input_dim), dtype,
                                minval=-bound, maxval=bound)
    bias = jax.random.uniform(kb, (embed_dim,), dtype,
                              minval=-bound, maxval=bound)
    return weight, bias


if __name__ == "__main__":
    # Small shapes consistent with the module: C plays the role of input_dim.
    B, C, H, W = 2, 32, 16, 16
    embed_dim = 64

    key = jax.random.PRNGKey(0)
    kx, kp = jax.random.split(key)
    x = jax.random.normal(kx, (B, C, H, W), jnp.float32)
    weight, bias = _init_linear_params(kp, input_dim=C, embed_dim=embed_dim)

    out = linear_nchw(x, weight, bias)
    jax.block_until_ready(out)

    # Sanity check against a pure-JAX transcription of the PyTorch forward.
    ref = jnp.transpose(
        (jnp.transpose(x, (0, 2, 3, 1)).reshape(B * H * W, C) @ weight.T
         + bias).reshape(B, H, W, embed_dim),
        (0, 3, 1, 2))
    assert out.shape == (B, embed_dim, H, W)
    assert jnp.allclose(out, ref, atol=1e-5, rtol=1e-5)

    print("KERNEL_OK")
</pallas_src>

<mosaic_0001>
module attributes {stable_mosaic.version = 11 : i64} {
  func.func @_linear_kernel(%arg0: i32, %arg1: i32, %arg2: i32, %arg3: memref<2x32x256xf32, #tpu.memory_space<vmem>>, %arg4: memref<64x32xf32, #tpu.memory_space<vmem>>, %arg5: memref<64x1xf32, #tpu.memory_space<vmem>>, %arg6: memref<2x64x256xf32, #tpu.memory_space<vmem>>) attributes {dimension_semantics = [#tpu.dimension_semantics<parallel>, #tpu.dimension_semantics<parallel>, #tpu.dimension_semantics<parallel>], iteration_bounds = array<i64: 1, 1, 1>, scalar_prefetch = 0 : i64, scratch_operands = 0 : i64, tpu.core_type = #tpu.core_type<tc>, window_params = [{transform_indices = @transform_0, window_bounds = array<i64: 2, 32, 256>}, {transform_indices = @transform_1, window_bounds = array<i64: 64, 32>}, {transform_indices = @transform_2, window_bounds = array<i64: 64, 1>}, {transform_indices = @transform_3, window_bounds = array<i64: 2, 64, 256>}]} {
    %c0 = arith.constant 0 : index
    %c0_0 = arith.constant 0 : index
    %0 = vector.load %arg4[%c0, %c0_0] : memref<64x32xf32, #tpu.memory_space<vmem>>, vector<64x32xf32>
    %c0_1 = arith.constant 0 : index
    %c0_2 = arith.constant 0 : index
    %1 = vector.load %arg5[%c0_1, %c0_2] : memref<64x1xf32, #tpu.memory_space<vmem>>, vector<64x1xf32>
    %c0_3 = arith.constant 0 : index
    %c0_4 = arith.constant 0 : index
    %c0_5 = arith.constant 0 : index
    %2 = vector.load %arg3[%c0_3, %c0_4, %c0_5] : memref<2x32x256xf32, #tpu.memory_space<vmem>>, vector<1x32x256xf32>
    %3 = vector.shape_cast %2 : vector<1x32x256xf32> to vector<32x256xf32>
    %cst = arith.constant dense<0.000000e+00> : vector<64x256xf32>
    %4 = tpu.matmul %0, %3, %cst {dimension_numbers = #tpu.dot_dimension_numbers<[1], [0], [0], [1], [0, 0, 1, 1], [], []>} : vector<64x32xf32>, vector<32x256xf32>, vector<64x256xf32> -> vector<64x256xf32>
    %5 = vector.broadcast %1 : vector<64x1xf32> to vector<64x256xf32>
    %6 = arith.addf %4, %5 : vector<64x256xf32>
    %c0_6 = arith.constant 0 : index
    %c0_7 = arith.constant 0 : index
    %c0_8 = arith.constant 0 : index
    %7 = vector.load %arg6[%c0_6, %c0_7, %c0_8] : memref<2x64x256xf32, #tpu.memory_space<vmem>>, vector<1x64x256xf32>
    %8 = vector.shape_cast %7 : vector<1x64x256xf32> to vector<64x256xf32>
    %9 = vector.shape_cast %6 : vector<64x256xf32> to vector<1x64x256xf32>
    tpu.vector_store %arg6[%c0_6, %c0_7, %c0_8], %9 {strides = array<i32>} : memref<2x64x256xf32, #tpu.memory_space<vmem>>, vector<1x64x256xf32>,
    %c1 = arith.constant 1 : index
    %c0_9 = arith.constant 0 : index
    %c0_10 = arith.constant 0 : index
    %10 = vector.load %arg3[%c1, %c0_9, %c0_10] : memref<2x32x256xf32, #tpu.memory_space<vmem>>, vector<1x32x256xf32>
    %11 = vector.shape_cast %10 : vector<1x32x256xf32> to vector<32x256xf32>
    %cst_11 = arith.constant dense<0.000000e+00> : vector<64x256xf32>
    %12 = tpu.matmul %0, %11, %cst_11 {dimension_numbers = #tpu.dot_dimension_numbers<[1], [0], [0], [1], [0, 0, 1, 1], [], []>} : vector<64x32xf32>, vector<32x256xf32>, vector<64x256xf32> -> vector<64x256xf32>
    %13 = vector.broadcast %1 : vector<64x1xf32> to vector<64x256xf32>
    %14 = arith.addf %12, %13 : vector<64x256xf32>
    %c1_12 = arith.constant 1 : index
    %c0_13 = arith.constant 0 : index
    %c0_14 = arith.constant 0 : index
    %15 = vector.load %arg6[%c1_12, %c0_13, %c0_14] : memref<2x64x256xf32, #tpu.memory_space<vmem>>, vector<1x64x256xf32>
    %16 = vector.shape_cast %15 : vector<1x64x256xf32> to vector<64x256xf32>
    %17 = vector.shape_cast %14 : vector<64x256xf32> to vector<1x64x256xf32>
    tpu.vector_store %arg6[%c1_12, %c0_13, %c0_14], %17 {strides = array<i32>} : memref<2x64x256xf32, #tpu.memory_space<vmem>>, vector<1x64x256xf32>,
    return
  }
  func.func @transform_0(%arg0: i32, %arg1: i32, %arg2: i32) -> (i32, i32, i32) {
    %c0_i32 = arith.constant 0 : i32
    %c0_i32_0 = arith.constant 0 : i32
    return %arg0, %c0_i32, %arg2 : i32, i32, i32
  }
  func.func @transform_1(%arg0: i32, %arg1: i32, %arg2: i32) -> (i32, i32) {
    %c0_i32 = arith.constant 0 : i32
    %c0_i32_0 = arith.constant 0 : i32
    return %arg1, %c0_i32 : i32, i32
  }
  func.func @transform_2(%arg0: i32, %arg1: i32, %arg2: i32) -> (i32, i32) {
    %c0_i32 = arith.constant 0 : i32
    %c0_i32_0 = arith.constant 0 : i32
    return %arg1, %c0_i32 : i32, i32
  }
  func.func @transform_3(%arg0: i32, %arg1: i32, %arg2: i32) -> (i32, i32, i32) {
    %c0_i32 = arith.constant 0 : i32
    return %arg0, %arg1, %arg2 : i32, i32, i32
  }
}

</mosaic_0001>

<llo_original>
// kernel: linear_nchw.1
$region0: #{linear_nchw.1}
  #allocation0 [shape = 'u32[]', space=smem, size = 0x4, offset = 0x4, fixed_abs, tag = 'smem constant byte address 0x4 - core index']
  #allocation1 [shape = 'u32[144,128]{1,0:T(1,128)}', space=vmem, size = 0x12000, scoped, tag = 'internal scratch']
  %s0 = inlined_call_operand.vmem [shape: f32[2,32,256], index: 0, kind: input, shape index: {}]
  %s1 = inlined_call_operand.vmem [shape: f32[64,32], index: 1, kind: input, shape index: {}]
  %s2 = inlined_call_operand.vmem [shape: f32[64,1], index: 2, kind: input, shape index: {}]
  %s3 = inlined_call_operand.vmem [shape: f32[2,64,256], index: 3, kind: output, shape index: {}]
  %s4 = sld [smem:[#allocation0]]
  $region22: #{linear_nchw.1} parent=0
    _
  %s6 = ssub.s32 1, %s4
  %s7 = scalar_select 0, %s6, %s4
  // Predicated region
  $region2: #{linear_nchw.1} parent=0 // pred_check
    _
  $region3: #{linear_nchw.1} parent=0 // pred_check_branch
    %9 = sbr.rel (0) target = $region5
  $region4: #{linear_nchw.1} parent=0 // pred_region
    _
  $region5: #{linear_nchw.1} parent=0 // pred_fallthru
    _
  // Predicated region
  $region6: #{linear_nchw.1} parent=0 // pred_check
    _
  $region7: #{linear_nchw.1} parent=0 // pred_check_branch
    %11 = sbr.rel (0) target = $region9
  $region8: #{linear_nchw.1} parent=0 // pred_region
    _
  $region9: #{linear_nchw.1} parent=0 // pred_fallthru
    _
  // Predicated region
  $region10: #{linear_nchw.1} parent=0 // pred_check
    _
  $region11: #{linear_nchw.1} parent=0 // pred_check_branch
    %13 = sbr.rel (0) target = $region13
  $region12: #{linear_nchw.1} parent=0 // pred_region
    _
  $region13: #{linear_nchw.1} parent=0 // pred_fallthru
    _
  %v14 = vld [vmem:[%s1] sm:$0xff]
  %v15 = vld [vmem:[%s1 + $0x8] sm:$0xff]
  %v16 = vld [vmem:[%s1 + $0x10] sm:$0xff]
  %v17 = vld [vmem:[%s1 + $0x18] sm:$0xff]
  %v18 = vld [vmem:[%s1 + $0x20] sm:$0xff]
  %v19 = vld [vmem:[%s1 + $0x28] sm:$0xff]
  %v20 = vld [vmem:[%s1 + $0x30] sm:$0xff]
  %v21 = vld [vmem:[%s1 + $0x38] sm:$0xff]
  %v22 = vld [vmem:[%s2] sm:$0xff]
  %v23 = vld [vmem:[%s2 + $0x8] sm:$0xff]
  %v24 = vld [vmem:[%s2 + $0x10] sm:$0xff]
  %v25 = vld [vmem:[%s2 + $0x18] sm:$0xff]
  %v26 = vld [vmem:[%s2 + $0x20] sm:$0xff]
  %v27 = vld [vmem:[%s2 + $0x28] sm:$0xff]
  %v28 = vld [vmem:[%s2 + $0x30] sm:$0xff]
  %v29 = vld [vmem:[%s2 + $0x38] sm:$0xff]
  %v30 = vld [vmem:[%s0] sm:$0xff]
  %v31 = vld [vmem:[%s0 + $0x8] sm:$0xff]
  %v32 = vld [vmem:[%s0 + $0x10] sm:$0xff]
  %v33 = vld [vmem:[%s0 + $0x18] sm:$0xff]
  %v34 = vld [vmem:[%s0 + $0x20] sm:$0xff]
  %v35 = vld [vmem:[%s0 + $0x28] sm:$0xff]
  %v36 = vld [vmem:[%s0 + $0x30] sm:$0xff]
  %v37 = vld [vmem:[%s0 + $0x38] sm:$0xff]
  %39 = vset.pattern.permute.xlu0 0
  %40 = vperm.xlu0 %39, %v22
  %v41 = vpop.permute.xlu0 %40
  %44 = vset.pattern.permute.xlu0 0
  %45 = vperm.xlu0 %44, %v23
  %v46 = vpop.permute.xlu0 %45
  %49 = vset.pattern.permute.xlu0 0
  %50 = vperm.xlu0 %49, %v24
  %v51 = vpop.permute.xlu0 %50
  %54 = vset.pattern.permute.xlu0 0
  %55 = vperm.xlu0 %54, %v25
  %v56 = vpop.permute.xlu0 %55
  %59 = vset.pattern.permute.xlu0 0
  %60 = vperm.xlu0 %59, %v26
  %v61 = vpop.permute.xlu0 %60
  %64 = vset.pattern.permute.xlu0 0
  %65 = vperm.xlu0 %64, %v27
  %v66 = vpop.permute.xlu0 %65
  %69 = vset.pattern.permute.xlu0 0
  %70 = vperm.xlu0 %69, %v28
  %v71 = vpop.permute.xlu0 %70
  %74 = vset.pattern.permute.xlu0 0
  %75 = vperm.xlu0 %74, %v29
  %v76 = vpop.permute.xlu0 %75
  %vm78 = vcmask 261120
  %v80 = vsel %vm78, %v14, 0
  %v83 = vsel %vm78, %v15, 0
  %v86 = vsel %vm78, %v16, 0
  %v89 = vsel %vm78, %v17, 0
  %v92 = vsel %vm78, %v18, 0
  %v95 = vsel %vm78, %v19, 0
  %v98 = vsel %vm78, %v20, 0
  %v101 = vsel %vm78, %v21, 0
  %103 = vmatprep.subr.mxu0 0.0
  %104 = vmatpush1.msra.mxu0 0.0
  %105 = vmatprep.subr.mxu0 0.0
  %106 = vmatpush1.msra.mxu0 0.0
  %107 = vmatprep.subr.mxu0 0.0
  %108 = vmatpush1.msra.mxu0 0.0
  %109 = vmatprep.subr.mxu0 0.0
  %110 = vmatpush1.msra.mxu0 0.0
  %111 = vmatprep.subr.mxu0 0.0
  %112 = vmatpush1.msra.mxu0 0.0
  %113 = vmatprep.subr.mxu0 0.0
  %114 = vmatpush1.msra.mxu0 0.0
  %115 = vmatprep.subr.mxu0 0.0
  %116 = vmatpush1.msra.mxu0 0.0
  %117 = vmatprep.subr.mxu0 0.0
  %118 = vmatpush1.msra.mxu0 0.0
  %119 = vmatprep.subr.mxu0 0.0
  %120 = vmatpush1.msra.mxu0 0.0
  %121 = vmatprep.subr.mxu0 0.0
  %122 = vmatpush1.msra.mxu0 0.0
  %123 = vmatprep.subr.mxu0 0.0
  %124 = vmatpush1.msra.mxu0 0.0
  %125 = vmatprep.subr.mxu0 0.0
  %126 = vmatpush1.msra.mxu0 0.0
  %127 = vmatprep.subr.mxu0 %v37
  %128 = vmatpush1.msra.mxu0 %v36
  %129 = vmatprep.subr.mxu0 %v35
  %130 = vmatpush1.msra.mxu0 %v34
  %131 = vmatprep.subr.mxu0 %v33
  %132 = vmatpush1.msra.mxu0 %v32
  %133 = vmatprep.subr.mxu0 %v31
  %134 = vmatpush1.msra.mxu0 %v30
  %135 = vmatprep.subr.mxu0 0.0
  %136 = vmatpush2.msra.mxu0 0.0
  %137 = vmatprep.subr.mxu0 0.0
  %138 = vmatpush2.msra.mxu0 0.0
  %139 = vmatprep.subr.mxu0 0.0
  %140 = vmatpush2.msra.mxu0 0.0
  %141 = vmatprep.subr.mxu0 0.0
  %142 = vmatpush2.msra.mxu0 0.0
  %143 = vmatprep.subr.mxu0 0.0
  %144 = vmatpush2.msra.mxu0 0.0
  %145 = vmatprep.subr.mxu0 0.0
  %146 = vmatpush2.msra.mxu0 0.0
  %147 = vmatprep.subr.mxu0 0.0
  %148 = vmatpush2.msra.mxu0 0.0
  %149 = vmatprep.subr.mxu0 0.0
  %150 = vmatpush2.msra.mxu0 0.0
  %151 = vmatprep.subr.mxu0 0.0
  %152 = vmatpush2.msra.mxu0 0.0
  %153 = vmatprep.subr.mxu0 0.0
  %154 = vmatpush2.msra.mxu0 0.0
  %155 = vmatprep.subr.mxu0 0.0
  %156 = vmatpush2.msra.mxu0 0.0
  %157 = vmatprep.subr.mxu0 0.0
  %158 = vmatpush2.msra.mxu0 0.0
  %159 = vmatprep.subr.mxu0 0.0
  %160 = vmatpush2.msra.mxu0 0.0
  %161 = vmatprep.subr.mxu0 0.0
  %162 = vmatpush2.msra.mxu0 0.0
  %163 = vmatprep.subr.mxu0 0.0
  %164 = vmatpush2.msra.mxu0 0.0
  %165 = vmatprep.subr.mxu0 0.0
  %166 = vmatpush2.msra.mxu0 0.0
  %167 = vmatprep.mubr.f32.mxu0 0.0
  %168 = vmatmul.mubr.f32.gmra.mxu0 %v80
  %v169 = vpop.f32.mrf.mxu0
  %v170 = vadd.f32 %v41, %v169
  %v171 = vpop.f32.mrf.mxu0
  %v172 = vadd.f32 %v41, %v171
  %173 = vmatprep.mubr.f32.mxu0 0.0
  %174 = vmatmul.mubr.f32.gmra.mxu0 %v83
  %v175 = vpop.f32.mrf.mxu0
  %v176 = vadd.f32 %v46, %v175
  %v177 = vpop.f32.mrf.mxu0
  %v178 = vadd.f32 %v46, %v177
  %179 = vmatprep.mubr.f32.mxu0 0.0
  %180 = vmatmul.mubr.f32.gmra.mxu0 %v86
  %v181 = vpop.f32.mrf.mxu0
  %v182 = vadd.f32 %v51, %v181
  %v183 = vpop.f32.mrf.mxu0
  %v184 = vadd.f32 %v51, %v183
  %185 = vmatprep.mubr.f32.mxu0 0.0
  %186 = vmatmul.mubr.f32.gmra.mxu0 %v89
  %v187 = vpop.f32.mrf.mxu0
  %v188 = vadd.f32 %v56, %v187
  %v189 = vpop.f32.mrf.mxu0
  %v190 = vadd.f32 %v56, %v189
  %191 = vmatprep.mubr.f32.mxu0 0.0
  %192 = vmatmul.mubr.f32.gmra.mxu0 %v92
  %v193 = vpop.f32.mrf.mxu0
  %v194 = vadd.f32 %v61, %v193
  %v195 = vpop.f32.mrf.mxu0
  %v196 = vadd.f32 %v61, %v195
  %197 = vmatprep.mubr.f32.mxu0 0.0
  %198 = vmatmul.mubr.f32.gmra.mxu0 %v95
  %v199 = vpop.f32.mrf.mxu0
  %v200 = vadd.f32 %v66, %v199
  %v201 = vpop.f32.mrf.mxu0
  %v202 = vadd.f32 %v66, %v201
  %203 = vmatprep.mubr.f32.mxu0 0.0
  %204 = vmatmul.mubr.f32.gmra.mxu0 %v98
  %v205 = vpop.f32.mrf.mxu0
  %v206 = vadd.f32 %v71, %v205
  %v207 = vpop.f32.mrf.mxu0
  %v208 = vadd.f32 %v71, %v207
  %209 = vmatprep.mubr.f32.mxu0 0.0
  %210 = vmatmul.mubr.f32.gmra.mxu0 %v101
  %v211 = vpop.f32.mrf.mxu0
  %v212 = vadd.f32 %v76, %v211
  %v213 = vpop.f32.mrf.mxu0
  %v214 = vadd.f32 %v76, %v213
  %215 = vdwg.mxu0
  %216 = vst [vmem:[%s3] sm:$0xff] %v170
  %217 = vst [vmem:[%s3 + $0x8] sm:$0xff] %v172
  %218 = vst [vmem:[%s3 + $0x10] sm:$0xff] %v176
  %219 = vst [vmem:[%s3 + $0x18] sm:$0xff] %v178
  %220 = vst [vmem:[%s3 + $0x20] sm:$0xff] %v182
  %221 = vst [vmem:[%s3 + $0x28] sm:$0xff] %v184
  %222 = vst [vmem:[%s3 + $0x30] sm:$0xff] %v188
  %223 = vst [vmem:[%s3 + $0x38] sm:$0xff] %v190
  %224 = vst [vmem:[%s3 + $0x40] sm:$0xff] %v194
  %225 = vst [vmem:[%s3 + $0x48] sm:$0xff] %v196
  %226 = vst [vmem:[%s3 + $0x50] sm:$0xff] %v200
  %227 = vst [vmem:[%s3 + $0x58] sm:$0xff] %v202
  %228 = vst [vmem:[%s3 + $0x60] sm:$0xff] %v206
  %229 = vst [vmem:[%s3 + $0x68] sm:$0xff] %v208
  %230 = vst [vmem:[%s3 + $0x70] sm:$0xff] %v212
  %231 = vst [vmem:[%s3 + $0x78] sm:$0xff] %v214
  %s232 = scalar_lea.vmem %s0, 64
  %v233 = vld [vmem:[%s232] sm:$0xff]
  %v234 = vld [vmem:[%s232 + $0x8] sm:$0xff]
  %v235 = vld [vmem:[%s232 + $0x10] sm:$0xff]
  %v236 = vld [vmem:[%s232 + $0x18] sm:$0xff]
  %v237 = vld [vmem:[%s232 + $0x20] sm:$0xff]
  %v238 = vld [vmem:[%s232 + $0x28] sm:$0xff]
  %v239 = vld [vmem:[%s232 + $0x30] sm:$0xff]
  %v240 = vld [vmem:[%s232 + $0x38] sm:$0xff]
  %241 = vmatprep.subr.mxu0 0.0
  %242 = vmatpush1.msra.mxu0 0.0
  %243 = vmatprep.subr.mxu0 0.0
  %244 = vmatpush1.msra.mxu0 0.0
  %245 = vmatprep.subr.mxu0 0.0
  %246 = vmatpush1.msra.mxu0 0.0
  %247 = vmatprep.subr.mxu0 0.0
  %248 = vmatpush1.msra.mxu0 0.0
  %249 = vmatprep.subr.mxu0 0.0
  %250 = vmatpush1.msra.mxu0 0.0
  %251 = vmatprep.subr.mxu0 0.0
  %252 = vmatpush1.msra.mxu0 0.0
  %253 = vmatprep.subr.mxu0 0.0
  %254 = vmatpush1.msra.mxu0 0.0
  %255 = vmatprep.subr.mxu0 0.0
  %256 = vmatpush1.msra.mxu0 0.0
  %257 = vmatprep.subr.mxu0 0.0
  %258 = vmatpush1.msra.mxu0 0.0
  %259 = vmatprep.subr.mxu0 0.0
  %260 = vmatpush1.msra.mxu0 0.0
  %261 = vmatprep.subr.mxu0 0.0
  %262 = vmatpush1.msra.mxu0 0.0
  %263 = vmatprep.subr.mxu0 0.0
  %264 = vmatpush1.msra.mxu0 0.0
  %265 = vmatprep.subr.mxu0 %v240
  %266 = vmatpush1.msra.mxu0 %v239
  %267 = vmatprep.subr.mxu0 %v238
  %268 = vmatpush1.msra.mxu0 %v237
  %269 = vmatprep.subr.mxu0 %v236
  %270 = vmatpush1.msra.mxu0 %v235
  %271 = vmatprep.subr.mxu0 %v234
  %272 = vmatpush1.msra.mxu0 %v233
  %273 = vmatprep.subr.mxu0 0.0
  %274 = vmatpush2.msra.mxu0 0.0
  %275 = vmatprep.subr.mxu0 0.0
  %276 = vmatpush2.msra.mxu0 0.0
  %277 = vmatprep.subr.mxu0 0.0
  %278 = vmatpush2.msra.mxu0 0.0
  %279 = vmatprep.subr.mxu0 0.0
  %280 = vmatpush2.msra.mxu0 0.0
  %281 = vmatprep.subr.mxu0 0.0
  %282 = vmatpush2.msra.mxu0 0.0
  %283 = vmatprep.subr.mxu0 0.0
  %284 = vmatpush2.msra.mxu0 0.0
  %285 = vmatprep.subr.mxu0 0.0
  %286 = vmatpush2.msra.mxu0 0.0
  %287 = vmatprep.subr.mxu0 0.0
  %288 = vmatpush2.msra.mxu0 0.0
  %289 = vmatprep.subr.mxu0 0.0
  %290 = vmatpush2.msra.mxu0 0.0
  %291 = vmatprep.subr.mxu0 0.0
  %292 = vmatpush2.msra.mxu0 0.0
  %293 = vmatprep.subr.mxu0 0.0
  %294 = vmatpush2.msra.mxu0 0.0
  %295 = vmatprep.subr.mxu0 0.0
  %296 = vmatpush2.msra.mxu0 0.0
  %297 = vmatprep.subr.mxu0 0.0
  %298 = vmatpush2.msra.mxu0 0.0
  %299 = vmatprep.subr.mxu0 0.0
  %300 = vmatpush2.msra.mxu0 0.0
  %301 = vmatprep.subr.mxu0 0.0
  %302 = vmatpush2.msra.mxu0 0.0
  %303 = vmatprep.subr.mxu0 0.0
  %304 = vmatpush2.msra.mxu0 0.0
  %305 = vmatprep.mubr.f32.mxu0 0.0
  %306 = vmatmul.mubr.f32.gmra.mxu0 %v80
  %v307 = vpop.f32.mrf.mxu0
  %v308 = vadd.f32 %v41, %v307
  %v309 = vpop.f32.mrf.mxu0
  %v310 = vadd.f32 %v41, %v309
  %311 = vmatprep.mubr.f32.mxu0 0.0
  %312 = vmatmul.mubr.f32.gmra.mxu0 %v83
  %v313 = vpop.f32.mrf.mxu0
  %v314 = vadd.f32 %v46, %v313
  %v315 = vpop.f32.mrf.mxu0
  %v316 = vadd.f32 %v46, %v315
  %317 = vmatprep.mubr.f32.mxu0 0.0
  %318 = vmatmul.mubr.f32.gmra.mxu0 %v86
  %v319 = vpop.f32.mrf.mxu0
  %v320 = vadd.f32 %v51, %v319
  %v321 = vpop.f32.mrf.mxu0
  %v322 = vadd.f32 %v51, %v321
  %323 = vmatprep.mubr.f32.mxu0 0.0
  %324 = vmatmul.mubr.f32.gmra.mxu0 %v89
  %v325 = vpop.f32.mrf.mxu0
  %v326 = vadd.f32 %v56, %v325
  %v327 = vpop.f32.mrf.mxu0
  %v328 = vadd.f32 %v56, %v327
  %329 = vmatprep.mubr.f32.mxu0 0.0
  %330 = vmatmul.mubr.f32.gmra.mxu0 %v92
  %v331 = vpop.f32.mrf.mxu0
  %v332 = vadd.f32 %v61, %v331
  %v333 = vpop.f32.mrf.mxu0
  %v334 = vadd.f32 %v61, %v333
  %335 = vmatprep.mubr.f32.mxu0 0.0
  %336 = vmatmul.mubr.f32.gmra.mxu0 %v95
  %v337 = vpop.f32.mrf.mxu0
  %v338 = vadd.f32 %v66, %v337
  %v339 = vpop.f32.mrf.mxu0
  %v340 = vadd.f32 %v66, %v339
  %341 = vmatprep.mubr.f32.mxu0 0.0
  %342 = vmatmul.mubr.f32.gmra.mxu0 %v98
  %v343 = vpop.f32.mrf.mxu0
  %v344 = vadd.f32 %v71, %v343
  %v345 = vpop.f32.mrf.mxu0
  %v346 = vadd.f32 %v71, %v345
  %347 = vmatprep.mubr.f32.mxu0 0.0
  %348 = vmatmul.mubr.f32.gmra.mxu0 %v101
  %v349 = vpop.f32.mrf.mxu0
  %v350 = vadd.f32 %v76, %v349
  %v351 = vpop.f32.mrf.mxu0
  %v352 = vadd.f32 %v76, %v351
  %353 = vdwg.mxu0
  %s354 = scalar_lea.vmem %s3, 128
  %355 = vst [vmem:[%s354] sm:$0xff] %v308
  %356 = vst [vmem:[%s354 + $0x8] sm:$0xff] %v310
  %357 = vst [vmem:[%s354 + $0x10] sm:$0xff] %v314
  %358 = vst [vmem:[%s354 + $0x18] sm:$0xff] %v316
  %359 = vst [vmem:[%s354 + $0x20] sm:$0xff] %v320
  %360 = vst [vmem:[%s354 + $0x28] sm:$0xff] %v322
  %361 = vst [vmem:[%s354 + $0x30] sm:$0xff] %v326
  %362 = vst [vmem:[%s354 + $0x38] sm:$0xff] %v328
  %363 = vst [vmem:[%s354 + $0x40] sm:$0xff] %v332
  %364 = vst [vmem:[%s354 + $0x48] sm:$0xff] %v334
  %365 = vst [vmem:[%s354 + $0x50] sm:$0xff] %v338
  %366 = vst [vmem:[%s354 + $0x58] sm:$0xff] %v340
  %367 = vst [vmem:[%s354 + $0x60] sm:$0xff] %v344
  %368 = vst [vmem:[%s354 + $0x68] sm:$0xff] %v346
  %369 = vst [vmem:[%s354 + $0x70] sm:$0xff] %v350
  %370 = vst [vmem:[%s354 + $0x78] sm:$0xff] %v352
  // Predicated region
  $region14: #{linear_nchw.1} parent=0 // pred_check
    _
  $region15: #{linear_nchw.1} parent=0 // pred_check_branch
    %372 = sbr.rel (0) target = $region17
  $region16: #{linear_nchw.1} parent=0 // pred_region
    _
  $region17: #{linear_nchw.1} parent=0 // pred_fallthru
    _
  // Predicated region
  $region18: #{linear_nchw.1} parent=0 // pred_check
    _
  $region19: #{linear_nchw.1} parent=0 // pred_check_branch
    %374 = sbr.rel (0) target = $region21
  $region20: #{linear_nchw.1} parent=0 // pred_region
    _
  $region21: #{linear_nchw.1} parent=0 // pred_fallthru
    _

</llo_original>
